<compile_context>
chip_gen: v7x
topology: tpu7x:2x2x1
jax: 0.10.0
libtpu: 0.0.40
codegen_flags: <defaults>
</compile_context>

<pallas_src>
import numpy as np
import jax
import jax.numpy as jnp
from jax.experimental import pallas as pl
from jax.experimental.pallas import tpu as pltpu

_SUBLANE = 8
_LANE = 128


# ----------------------------------------------------------------------------
# Pallas kernel: full ElmanRNN_tp1 forward
# ----------------------------------------------------------------------------
def elman_rnn_kernel(x_ref,    # (T*Np, D_in) bf16  time-major flattened input
                     h0_ref,   # (Np, H)      f32   initial hidden state
                     wi_ref,   # (D_in, H)    bf16  input_linear.weight.T
                     wh_ref,   # (H, H)       bf16  hidden_linear.weight.T
                     wo_ref,   # (H, Op)      bf16  linear3.weight.T (lane-padded)
                     bih_ref,  # (1, H)       f32   bi + bh (folded recurrent bias)
                     bh_ref,   # (1, H)       f32   hidden_linear.bias
                     bo_ref,   # (1, Op)      f32   linear3.bias (-1e30 in padding)
                     out_ref,  # (T*Np, Op)   f32   softmax(linear3(z)), lane-dense
                     ht_ref):  # (Np, H)      f32   final hidden state
    TNp = x_ref.shape[0]
    Np = h0_ref.shape[0]
    T = TNp // Np

    # (1) Batched input projection for all time steps at once, biases folded.
    #     bf16 operands on the MXU, f32 accumulation.
    xi = (jnp.dot(x_ref[...], wi_ref[...], preferred_element_type=jnp.float32)
          + bih_ref[...])

    # (2) Serial recurrence — the only work left on the critical path.
    #     Wh loaded once; loop fully unrolled (static T); carry stays f32,
    #     only the MXU operand is cast to bf16 per step.
    wh = wh_ref[...]
    ht = h0_ref[...]
    hs = []
    for t in range(T):
        ht = jnp.tanh(
            xi[t * Np:(t + 1) * Np, :]
            + jnp.dot(ht.astype(jnp.bfloat16), wh,
                      preferred_element_type=jnp.float32))
        hs.append(ht)
    ht_ref[...] = ht

    # (3) Non-recurrent tail, batched over all T*Np rows, fed straight from
    #     vregs (no VMEM round trip for z).
    z = jnp.concatenate(hs, axis=0)                          # (T*Np, H) f32
    htp1 = jnp.tanh(
        jnp.dot(z.astype(jnp.bfloat16), wh, preferred_element_type=jnp.float32)
        + bh_ref[...])
    logits = (jnp.dot(htp1.astype(jnp.bfloat16), wo_ref[...],
                      preferred_element_type=jnp.float32)
              + bo_ref[...])                                  # (T*Np, Op)

    # Numerically stable softmax over the (padded) class dim.  Padded columns
    # carry a -1e30 bias -> exp() == 0, so the denominator only sums real
    # classes.  Divide goes to the EUP via approx reciprocal.
    m = jnp.max(logits, axis=-1, keepdims=True)
    e = jnp.exp(logits - m)
    inv = pl.reciprocal(jnp.sum(e, axis=-1, keepdims=True), approx=True)
    out_ref[...] = e * inv                                    # single lane-dense slab store


# ----------------------------------------------------------------------------
# Wrapper: layout plumbing + pallas_call
# ----------------------------------------------------------------------------
def _round_up(v, m):
    return ((v + m - 1) // m) * m


def elman_rnn_tp1_forward(x, h0, params):
    """x: (N, T, D_in), h0: (N, H). Returns (out (N, T, O), ht (N, H))."""
    N, T, D_in = x.shape
    H = params["Wh"].shape[0]
    O = params["Wo"].shape[0]

    # Pad batch up to a full sublane tile so every per-step slice/store in the
    # kernel is (8, lanes)-aligned.  Padded rows are independent garbage and
    # are sliced off below.
    Np = _round_up(max(N, _SUBLANE), _SUBLANE)
    # Pad the output (class) dim to a full lane tile so the softmax output is
    # stored with unmasked full-width vst (last dim 128) instead of masked
    # 16-lane partial stores.
    Op = _round_up(max(O, _LANE), _LANE)

    # time-major flattened layout so each per-step slice is a contiguous,
    # tile-aligned row block.
    x_tm = jnp.transpose(x.astype(jnp.float32), (1, 0, 2))        # (T, N, D_in)
    x_tm = jnp.pad(x_tm, ((0, 0), (0, Np - N), (0, 0)))
    x_flat = x_tm.reshape(T * Np, D_in).astype(jnp.bfloat16)

    h0_p = jnp.pad(h0.astype(jnp.float32), ((0, Np - N), (0, 0)))

    wo_p = jnp.pad(params["Wo"].T.astype(jnp.float32),
                   ((0, 0), (0, Op - O))).astype(jnp.bfloat16)     # (H, Op)
    bo_p = jnp.pad(params["bo"].astype(jnp.float32), ((0, Op - O),),
                   constant_values=-1e30)[None, :]                 # (1, Op)

    vmem = pl.BlockSpec(memory_space=pltpu.MemorySpace.VMEM)

    out_pad, ht_p = pl.pallas_call(
        elman_rnn_kernel,
        out_shape=(
            jax.ShapeDtypeStruct((T * Np, Op), jnp.float32),
            jax.ShapeDtypeStruct((Np, H), jnp.float32),
        ),
        in_specs=[vmem] * 8,
        out_specs=(vmem, vmem),
    )(
        x_flat,
        h0_p,
        params["Wi"].T.astype(jnp.bfloat16),
        params["Wh"].T.astype(jnp.bfloat16),
        wo_p,
        (params["bi"] + params["bh"])[None, :].astype(jnp.float32),
        params["bh"][None, :].astype(jnp.float32),
        bo_p,
    )

    out = jnp.transpose(out_pad.reshape(T, Np, Op)[:, :N, :O], (1, 0, 2))
    ht = ht_p[:N, :]
    return out, ht


# ----------------------------------------------------------------------------
# Pure numpy reference (mirrors the PyTorch forward exactly, f32)
# ----------------------------------------------------------------------------
def np_reference(x, h0, p):
    x = np.asarray(x, np.float32)
    N, T, _ = x.shape
    Wi, bi = np.asarray(p["Wi"]), np.asarray(p["bi"])
    Wh, bh = np.asarray(p["Wh"]), np.asarray(p["bh"])
    Wo, bo = np.asarray(p["Wo"]), np.asarray(p["bo"])
    H = Wh.shape[0]

    ht = np.asarray(h0, np.float32)
    z = np.zeros((N, T, H), np.float32)
    for t in range(T):
        ht = np.tanh(x[:, t] @ Wi.T + bi + ht @ Wh.T + bh)
        z[:, t] = np.tanh(ht @ Wh.T + bh)
    logits = z @ Wo.T + bo
    m = logits.max(axis=-1, keepdims=True)
    e = np.exp(logits - m)
    out = e / e.sum(axis=-1, keepdims=True)
    return out, ht


# ----------------------------------------------------------------------------
if __name__ == "__main__":
    # small shapes consistent with the module
    N, T, D_in, H, O = 2, 8, 16, 32, 16

    key = jax.random.PRNGKey(0)
    keys = jax.random.split(key, 8)
    params = {
        "Wi": 0.1 * jax.random.normal(keys[0], (H, D_in), jnp.float32),
        "bi": 0.1 * jax.random.normal(keys[1], (H,), jnp.float32),
        "Wh": 0.1 * jax.random.normal(keys[2], (H, H), jnp.float32),
        "bh": 0.1 * jax.random.normal(keys[3], (H,), jnp.float32),
        "Wo": 0.1 * jax.random.normal(keys[4], (O, H), jnp.float32),
        "bo": 0.1 * jax.random.normal(keys[5], (O,), jnp.float32),
    }
    x = jax.random.normal(keys[6], (N, T, D_in), jnp.float32)
    h0 = 0.1 * jax.random.normal(keys[7], (N, H), jnp.float32)

    out, ht = elman_rnn_tp1_forward(x, h0, params)
    out = jax.block_until_ready(out)
    ht = jax.block_until_ready(ht)

    out_ref, ht_ref = np_reference(x, h0, params)
    assert out.shape == (N, T, O) and ht.shape == (N, H)
    # bf16 MXU operands (f32 accumulation / f32 carry) => ~2e-2 tolerance.
    np.testing.assert_allclose(np.asarray(out), out_ref, rtol=2e-2, atol=2e-2)
    np.testing.assert_allclose(np.asarray(ht), ht_ref, rtol=2e-2, atol=2e-2)

    print("KERNEL_OK")
</pallas_src>

<mosaic_0001>
module attributes {stable_mosaic.version = 11 : i64} {
  func.func @elman_rnn_kernel(%arg0: memref<64x16xbf16, #tpu.memory_space<vmem>>, %arg1: memref<8x32xf32, #tpu.memory_space<vmem>>, %arg2: memref<16x32xbf16, #tpu.memory_space<vmem>>, %arg3: memref<32x32xbf16, #tpu.memory_space<vmem>>, %arg4: memref<32x128xbf16, #tpu.memory_space<vmem>>, %arg5: memref<1x32xf32, #tpu.memory_space<vmem>>, %arg6: memref<1x32xf32, #tpu.memory_space<vmem>>, %arg7: memref<1x128xf32, #tpu.memory_space<vmem>>, %arg8: memref<64x128xf32, #tpu.memory_space<vmem>>, %arg9: memref<8x32xf32, #tpu.memory_space<vmem>>) attributes {dimension_semantics = [], scalar_prefetch = 0 : i64, scratch_operands = 0 : i64, tpu.core_type = #tpu.core_type<tc>} {
    %c0 = arith.constant 0 : index
    %c0_0 = arith.constant 0 : index
    %0 = vector.load %arg0[%c0, %c0_0] : memref<64x16xbf16, #tpu.memory_space<vmem>>, vector<64x16xbf16>
    %c0_1 = arith.constant 0 : index
    %c0_2 = arith.constant 0 : index
    %1 = vector.load %arg2[%c0_1, %c0_2] : memref<16x32xbf16, #tpu.memory_space<vmem>>, vector<16x32xbf16>
    %cst = arith.constant dense<0.000000e+00> : vector<64x32xf32>
    %2 = tpu.matmul %0, %1, %cst {dimension_numbers = #tpu.dot_dimension_numbers<[1], [0], [0], [1], [0, 0, 1, 1], [], []>} : vector<64x16xbf16>, vector<16x32xbf16>, vector<64x32xf32> -> vector<64x32xf32>
    %c0_3 = arith.constant 0 : index
    %c0_4 = arith.constant 0 : index
    %3 = vector.load %arg5[%c0_3, %c0_4] : memref<1x32xf32, #tpu.memory_space<vmem>>, vector<1x32xf32>
    %4 = vector.broadcast %3 : vector<1x32xf32> to vector<64x32xf32>
    %5 = arith.addf %2, %4 : vector<64x32xf32>
    %c0_5 = arith.constant 0 : index
    %c0_6 = arith.constant 0 : index
    %6 = vector.load %arg3[%c0_5, %c0_6] : memref<32x32xbf16, #tpu.memory_space<vmem>>, vector<32x32xbf16>
    %c0_7 = arith.constant 0 : index
    %c0_8 = arith.constant 0 : index
    %7 = vector.load %arg1[%c0_7, %c0_8] : memref<8x32xf32, #tpu.memory_space<vmem>>, vector<8x32xf32>
    %8 = vector.extract_strided_slice %5 {offsets = [0, 0], sizes = [8, 32], strides = [1, 1]} : vector<64x32xf32> to vector<8x32xf32>
    %9 = arith.truncf %7 : vector<8x32xf32> to vector<8x32xbf16>
    %cst_9 = arith.constant dense<0.000000e+00> : vector<8x32xf32>
    %10 = tpu.matmul %9, %6, %cst_9 {dimension_numbers = #tpu.dot_dimension_numbers<[1], [0], [0], [1], [0, 0, 1, 1], [], []>} : vector<8x32xbf16>, vector<32x32xbf16>, vector<8x32xf32> -> vector<8x32xf32>
    %11 = arith.addf %8, %10 : vector<8x32xf32>
    %12 = math.tanh %11 : vector<8x32xf32>
    %13 = vector.extract_strided_slice %5 {offsets = [8, 0], sizes = [8, 32], strides = [1, 1]} : vector<64x32xf32> to vector<8x32xf32>
    %14 = arith.truncf %12 : vector<8x32xf32> to vector<8x32xbf16>
    %cst_10 = arith.constant dense<0.000000e+00> : vector<8x32xf32>
    %15 = tpu.matmul %14, %6, %cst_10 {dimension_numbers = #tpu.dot_dimension_numbers<[1], [0], [0], [1], [0, 0, 1, 1], [], []>} : vector<8x32xbf16>, vector<32x32xbf16>, vector<8x32xf32> -> vector<8x32xf32>
    %16 = arith.addf %13, %15 : vector<8x32xf32>
    %17 = math.tanh %16 : vector<8x32xf32>
    %18 = vector.extract_strided_slice %5 {offsets = [16, 0], sizes = [8, 32], strides = [1, 1]} : vector<64x32xf32> to vector<8x32xf32>
    %19 = arith.truncf %17 : vector<8x32xf32> to vector<8x32xbf16>
    %cst_11 = arith.constant dense<0.000000e+00> : vector<8x32xf32>
    %20 = tpu.matmul %19, %6, %cst_11 {dimension_numbers = #tpu.dot_dimension_numbers<[1], [0], [0], [1], [0, 0, 1, 1], [], []>} : vector<8x32xbf16>, vector<32x32xbf16>, vector<8x32xf32> -> vector<8x32xf32>
    %21 = arith.addf %18, %20 : vector<8x32xf32>
    %22 = math.tanh %21 : vector<8x32xf32>
    %23 = vector.extract_strided_slice %5 {offsets = [24, 0], sizes = [8, 32], strides = [1, 1]} : vector<64x32xf32> to vector<8x32xf32>
    %24 = arith.truncf %22 : vector<8x32xf32> to vector<8x32xbf16>
    %cst_12 = arith.constant dense<0.000000e+00> : vector<8x32xf32>
    %25 = tpu.matmul %24, %6, %cst_12 {dimension_numbers = #tpu.dot_dimension_numbers<[1], [0], [0], [1], [0, 0, 1, 1], [], []>} : vector<8x32xbf16>, vector<32x32xbf16>, vector<8x32xf32> -> vector<8x32xf32>
    %26 = arith.addf %23, %25 : vector<8x32xf32>
    %27 = math.tanh %26 : vector<8x32xf32>
    %28 = vector.extract_strided_slice %5 {offsets = [32, 0], sizes = [8, 32], strides = [1, 1]} : vector<64x32xf32> to vector<8x32xf32>
    %29 = arith.truncf %27 : vector<8x32xf32> to vector<8x32xbf16>
    %cst_13 = arith.constant dense<0.000000e+00> : vector<8x32xf32>
    %30 = tpu.matmul %29, %6, %cst_13 {dimension_numbers = #tpu.dot_dimension_numbers<[1], [0], [0], [1], [0, 0, 1, 1], [], []>} : vector<8x32xbf16>, vector<32x32xbf16>, vector<8x32xf32> -> vector<8x32xf32>
    %31 = arith.addf %28, %30 : vector<8x32xf32>
    %32 = math.tanh %31 : vector<8x32xf32>
    %33 = vector.extract_strided_slice %5 {offsets = [40, 0], sizes = [8, 32], strides = [1, 1]} : vector<64x32xf32> to vector<8x32xf32>
    %34 = arith.truncf %32 : vector<8x32xf32> to vector<8x32xbf16>
    %cst_14 = arith.constant dense<0.000000e+00> : vector<8x32xf32>
    %35 = tpu.matmul %34, %6, %cst_14 {dimension_numbers = #tpu.dot_dimension_numbers<[1], [0], [0], [1], [0, 0, 1, 1], [], []>} : vector<8x32xbf16>, vector<32x32xbf16>, vector<8x32xf32> -> vector<8x32xf32>
    %36 = arith.addf %33, %35 : vector<8x32xf32>
    %37 = math.tanh %36 : vector<8x32xf32>
    %38 = vector.extract_strided_slice %5 {offsets = [48, 0], sizes = [8, 32], strides = [1, 1]} : vector<64x32xf32> to vector<8x32xf32>
    %39 = arith.truncf %37 : vector<8x32xf32> to vector<8x32xbf16>
    %cst_15 = arith.constant dense<0.000000e+00> : vector<8x32xf32>
    %40 = tpu.matmul %39, %6, %cst_15 {dimension_numbers = #tpu.dot_dimension_numbers<[1], [0], [0], [1], [0, 0, 1, 1], [], []>} : vector<8x32xbf16>, vector<32x32xbf16>, vector<8x32xf32> -> vector<8x32xf32>
    %41 = arith.addf %38, %40 : vector<8x32xf32>
    %42 = math.tanh %41 : vector<8x32xf32>
    %43 = vector.extract_strided_slice %5 {offsets = [56, 0], sizes = [8, 32], strides = [1, 1]} : vector<64x32xf32> to vector<8x32xf32>
    %44 = arith.truncf %42 : vector<8x32xf32> to vector<8x32xbf16>
    %cst_16 = arith.constant dense<0.000000e+00> : vector<8x32xf32>
    %45 = tpu.matmul %44, %6, %cst_16 {dimension_numbers = #tpu.dot_dimension_numbers<[1], [0], [0], [1], [0, 0, 1, 1], [], []>} : vector<8x32xbf16>, vector<32x32xbf16>, vector<8x32xf32> -> vector<8x32xf32>
    %46 = arith.addf %43, %45 : vector<8x32xf32>
    %47 = math.tanh %46 : vector<8x32xf32>
    %c0_17 = arith.constant 0 : index
    %c0_18 = arith.constant 0 : index
    %48 = vector.load %arg9[%c0_17, %c0_18] : memref<8x32xf32, #tpu.memory_space<vmem>>, vector<8x32xf32>
    tpu.vector_store %arg9[%c0_17, %c0_18], %47 {strides = array<i32>} : memref<8x32xf32, #tpu.memory_space<vmem>>, vector<8x32xf32>,
    %49 = tpu.concatenate %12, %17, %22, %27, %32, %37, %42, %47 in 0 : vector<8x32xf32>, vector<8x32xf32>, vector<8x32xf32>, vector<8x32xf32>, vector<8x32xf32>, vector<8x32xf32>, vector<8x32xf32>, vector<8x32xf32> -> vector<64x32xf32>
    %50 = arith.truncf %49 : vector<64x32xf32> to vector<64x32xbf16>
    %cst_19 = arith.constant dense<0.000000e+00> : vector<64x32xf32>
    %51 = tpu.matmul %50, %6, %cst_19 {dimension_numbers = #tpu.dot_dimension_numbers<[1], [0], [0], [1], [0, 0, 1, 1], [], []>} : vector<64x32xbf16>, vector<32x32xbf16>, vector<64x32xf32> -> vector<64x32xf32>
    %c0_20 = arith.constant 0 : index
    %c0_21 = arith.constant 0 : index
    %52 = vector.load %arg6[%c0_20, %c0_21] : memref<1x32xf32, #tpu.memory_space<vmem>>, vector<1x32xf32>
    %53 = vector.broadcast %52 : vector<1x32xf32> to vector<64x32xf32>
    %54 = arith.addf %51, %53 : vector<64x32xf32>
    %55 = math.tanh %54 : vector<64x32xf32>
    %56 = arith.truncf %55 : vector<64x32xf32> to vector<64x32xbf16>
    %c0_22 = arith.constant 0 : index
    %c0_23 = arith.constant 0 : index
    %57 = vector.load %arg4[%c0_22, %c0_23] : memref<32x128xbf16, #tpu.memory_space<vmem>>, vector<32x128xbf16>
    %cst_24 = arith.constant dense<0.000000e+00> : vector<64x128xf32>
    %58 = tpu.matmul %56, %57, %cst_24 {dimension_numbers = #tpu.dot_dimension_numbers<[1], [0], [0], [1], [0, 0, 1, 1], [], []>} : vector<64x32xbf16>, vector<32x128xbf16>, vector<64x128xf32> -> vector<64x128xf32>
    %c0_25 = arith.constant 0 : index
    %c0_26 = arith.constant 0 : index
    %59 = vector.load %arg7[%c0_25, %c0_26] : memref<1x128xf32, #tpu.memory_space<vmem>>, vector<1x128xf32>
    %60 = vector.broadcast %59 : vector<1x128xf32> to vector<64x128xf32>
    %61 = arith.addf %58, %60 : vector<64x128xf32>
    %cst_27 = arith.constant dense<0xFF800000> : vector<64xf32>
    %62 = vector.multi_reduction <maximumf>, %61, %cst_27 [1] : vector<64x128xf32> to vector<64xf32>
    %63 = vector.shape_cast %62 : vector<64xf32> to vector<64x1xf32>
    %64 = vector.broadcast %63 : vector<64x1xf32> to vector<64x128xf32>
    %65 = arith.subf %61, %64 : vector<64x128xf32>
    %66 = math.exp %65 : vector<64x128xf32>
    %cst_28 = arith.constant dense<0.000000e+00> : vector<64xf32>
    %67 = vector.multi_reduction <add>, %66, %cst_28 [1] : vector<64x128xf32> to vector<64xf32>
    %68 = vector.shape_cast %67 : vector<64xf32> to vector<64x1xf32>
    %69 = tpu.reciprocal %68 {approx = true} : vector<64x1xf32> -> vector<64x1xf32>
    %70 = vector.broadcast %69 : vector<64x1xf32> to vector<64x128xf32>
    %71 = arith.mulf %66, %70 : vector<64x128xf32>
    %c0_29 = arith.constant 0 : index
    %c0_30 = arith.constant 0 : index
    %72 = vector.load %arg8[%c0_29, %c0_30] : memref<64x128xf32, #tpu.memory_space<vmem>>, vector<64x128xf32>
    tpu.vector_store %arg8[%c0_29, %c0_30], %71 {strides = array<i32>} : memref<64x128xf32, #tpu.memory_space<vmem>>, vector<64x128xf32>,
    return
  }
}

</mosaic_0001>

<llo_original>
// kernel: tpu_custom_call.1
$region0: #{tpu_custom_call.1}
  #allocation0 [shape = 'u32[]', space=smem, size = 0x4, offset = 0x4, fixed_abs, tag = 'smem constant byte address 0x4 - core index']
  #allocation1 [shape = 'u32[144,128]{1,0:T(1,128)}', space=vmem, size = 0x12000, scoped, tag = 'internal scratch']
  %s0 = inlined_call_operand.vmem [shape: bf16[64,16], index: 0, kind: input, shape index: {}]
  %s1 = inlined_call_operand.vmem [shape: f32[8,32], index: 1, kind: input, shape index: {}]
  %s2 = inlined_call_operand.hbm [shape: bf16[16,32], index: 2, kind: input, shape index: {}]
  %s3 = inlined_call_operand.vmem [shape: bf16[32,32], index: 3, kind: input, shape index: {}]
  %s4 = inlined_call_operand.vmem [shape: bf16[32,128], index: 4, kind: input, shape index: {}]
  %s5 = inlined_call_operand.vmem [shape: f32[1,32], index: 5, kind: input, shape index: {}]
  %s6 = inlined_call_operand.vmem [shape: f32[1,32], index: 6, kind: input, shape index: {}]
  %s7 = inlined_call_operand.vmem [shape: f32[1,128], index: 7, kind: input, shape index: {}]
  %s8 = inlined_call_operand.hbm [shape: f32[64,128], index: 8, kind: output, shape index: {0}]
  %s9 = inlined_call_operand.hbm [shape: f32[8,32], index: 9, kind: output, shape index: {1}]
  %10 = xla_tuple %s8, %s9
  %s11 = sld [smem:[#allocation0]]
  $region54: #{tpu_custom_call.1} parent=0
    _
  %s13 = ssub.s32 1, %s11
  %s14 = scalar_select 0, %s13, %s11
  $region1: #{tpu_custom_call.1} parent=0
    #allocation2 [shape = 'u8[4096]{0}', space=vmem, size = 0x1000, scoped, tag = 'input window, operand 2, single buffered']
    #allocation3 [shape = 's32[1]{0}', space=sflag, size = 0x4, scoped, tag = 'scoped memory for tpu_custom_call.1']
    #allocation4 [shape = 's32[1]{0}', space=sflag, size = 0x4, scoped, tag = 'scoped memory for tpu_custom_call.1']
    #allocation5 [shape = 'u8[32768]{0}', space=vmem, size = 0x8000, scoped, tag = 'output window, operand 0, single buffered']
    #allocation6 [shape = 'u8[4096]{0}', space=vmem, size = 0x1000, scoped, tag = 'output window, operand 1, single buffered']
    #allocation7 [shape = 's32[1]{0}', space=sflag, size = 0x4, scoped, tag = 'scoped memory for tpu_custom_call.1']
    %15 = vsyncpa [#allocation3], 0
    %16 = vsyncpa [#allocation4], 0
    %17 = vsyncpa [#allocation7], 0
    // Predicated region
    $region2: #{tpu_custom_call.1} parent=1 // pred_check
      _
    $region3: #{tpu_custom_call.1} parent=1 // pred_check_branch
      %19 = sbr.rel (0) target = $region5
    $region4: #{tpu_custom_call.1} parent=1 // pred_region
      _
    $region5: #{tpu_custom_call.1} parent=1 // pred_fallthru
      _
    // Predicated region
    $region6: #{tpu_custom_call.1} parent=1 // pred_check
      _
    $region7: #{tpu_custom_call.1} parent=1 // pred_check_branch
      %21 = sbr.rel (0) target = $region9
    $region8: #{tpu_custom_call.1} parent=1 // pred_region
      _
    $region9: #{tpu_custom_call.1} parent=1 // pred_fallthru
      _
    // Predicated region
    $region10: #{tpu_custom_call.1} parent=1 // pred_check
      _
    $region11: #{tpu_custom_call.1} parent=1 // pred_check_branch
      %23 = sbr.rel (0) target = $region13
    $region12: #{tpu_custom_call.1} parent=1 // pred_region
      %s25 = ssub.s32 128, 128
      %26 = vsyncadd [#allocation3], %s25
      %s27 = sshll.u32 [#allocation2], 4
      %s28 = int_to_ptr.vmem [resolvable:$true] %s27
      %33 = dma.hbm_to_vmem [thread:$0]  %s2, 128, %s28, [#allocation3], 64, 64, 4
    $region13: #{tpu_custom_call.1} parent=1 // pred_fallthru
      _
    // Predicated region
    $region14: #{tpu_custom_call.1} parent=1 // pred_check
      _
    $region15: #{tpu_custom_call.1} parent=1 // pred_check_branch
      %35 = sbr.rel (0) target = $region17
    $region16: #{tpu_custom_call.1} parent=1 // pred_region
      _
    $region17: #{tpu_custom_call.1} parent=1 // pred_fallthru
      _
    // Predicated region
    $region18: #{tpu_custom_call.1} parent=1 // pred_check
      _
    $region19: #{tpu_custom_call.1} parent=1 // pred_check_branch
      %37 = sbr.rel (0) target = $region21
    $region20: #{tpu_custom_call.1} parent=1 // pred_region
      _
    $region21: #{tpu_custom_call.1} parent=1 // pred_fallthru
      _
    // Predicated region
    $region22: #{tpu_custom_call.1} parent=1 // pred_check
      _
    $region23: #{tpu_custom_call.1} parent=1 // pred_check_branch
      %39 = sbr.rel (0) target = $region25
    $region24: #{tpu_custom_call.1} parent=1 // pred_region
      _
    $region25: #{tpu_custom_call.1} parent=1 // pred_fallthru
      _
    // Predicated region
    $region26: #{tpu_custom_call.1} parent=1 // pred_check
      _
    $region27: #{tpu_custom_call.1} parent=1 // pred_check_branch
      %41 = sbr.rel (0) target = $region29
    $region28: #{tpu_custom_call.1} parent=1 // pred_region
      _
    $region29: #{tpu_custom_call.1} parent=1 // pred_fallthru
      _
    // Predicated region
    $region30: #{tpu_custom_call.1} parent=1 // pred_check
      _
    $region31: #{tpu_custom_call.1} parent=1 // pred_check_branch
      %43 = sbr.rel (0) target = $region33
    $region32: #{tpu_custom_call.1} parent=1 // pred_region
      _
    $region33: #{tpu_custom_call.1} parent=1 // pred_fallthru
      _
    // Predicated region
    $region34: #{tpu_custom_call.1} parent=1 // pred_check
      _
    $region35: #{tpu_custom_call.1} parent=1 // pred_check_branch
      %45 = sbr.rel (0) target = $region37
    $region36: #{tpu_custom_call.1} parent=1 // pred_region
      %46 = dma.done [#allocation3], 128
    $region37: #{tpu_custom_call.1} parent=1 // pred_fallthru
      _
    %v48 = vld [vmem:[%s0] sm:$0xf]
    %v49 = vld [vmem:[%s0 + $0x4] sm:$0xf]
    %v50 = vld [vmem:[%s0 + $0x8] sm:$0xf]
    %v51 = vld [vmem:[%s0 + $0xc] sm:$0xf]
    %v52 = vld [vmem:[%s0 + $0x10] sm:$0xf]
    %v53 = vld [vmem:[%s0 + $0x14] sm:$0xf]
    %v54 = vld [vmem:[%s0 + $0x18] sm:$0xf]
    %v55 = vld [vmem:[%s0 + $0x1c] sm:$0xf]
    %v56 = vld [vmem:[#allocation2] sm:$0xf]
    %v57 = vld [vmem:[#allocation2 + $0x4] sm:$0xf]
    %v58 = vld [vmem:[%s5] sm:$0x1]
    %v60 = vlaneseq
    %v61 = vshrl.u32 %v60, 7
    %v62 = vsub.s32 0, %v61
    %v63 = vrot.slane %v58, %v62
    %v73 = vunpack.c.l.b16 %v48
    %v74 = vunpack.c.l.b16 %v49
    %v75 = vunpack.c.l.b16 %v50
    %v76 = vunpack.c.l.b16 %v51
    %v77 = vunpack.c.l.b16 %v52
    %v78 = vunpack.c.l.b16 %v53
    %v79 = vunpack.c.l.b16 %v54
    %v80 = vunpack.c.l.b16 %v55
    %v81 = vpack.c.b16 %v74, %v73
    %v82 = vpack.c.b16 %v76, %v75
    %v83 = vpack.c.b16 %v78, %v77
    %v84 = vpack.c.b16 %v80, %v79
    %v87 = vunpack.c.l.b16 %v56
    %v88 = vunpack.c.l.b16 %v57
    %v89 = vpack.c.b16 %v88, %v87
    %vm91 = vcmask 130048
    %v93 = vsel %vm91, %v81, 0
    %v96 = vsel %vm91, %v82, 0
    %v99 = vsel %vm91, %v83, 0
    %v102 = vsel %vm91, %v84, 0
    %104 = vmatprep.subr.bf16.mxu0 0
    %105 = vmatpush1.bf16.msra.mxu0 %v89
    %106 = vmatprep.subr.bf16.mxu0 0
    %107 = vmatpush1.bf16.msra.mxu0 0
    %108 = vmatprep.subr.bf16.mxu0 0
    %109 = vmatpush1.bf16.msra.mxu0 0
    %110 = vmatprep.subr.bf16.mxu0 0
    %111 = vmatpush1.bf16.msra.mxu0 0
    %112 = vmatprep.subr.bf16.mxu0 0
    %113 = vmatpush1.bf16.msra.mxu0 0
    %114 = vmatprep.subr.bf16.mxu0 0
    %115 = vmatpush1.bf16.msra.mxu0 0
    %116 = vmatprep.subr.bf16.mxu0 0
    %117 = vmatpush1.bf16.msra.mxu0 0
    %118 = vmatprep.subr.bf16.mxu0 0
    %119 = vmatpush1.bf16.msra.mxu0 0
    %120 = vmatprep.subr.bf16.mxu0 0
    %121 = vmatpush1.bf16.msra.mxu0 0
    %122 = vmatprep.subr.bf16.mxu0 0
    %123 = vmatpush1.bf16.msra.mxu0 0
    %124 = vmatprep.subr.bf16.mxu0 0
    %125 = vmatpush1.bf16.msra.mxu0 0
    %126 = vmatprep.subr.bf16.mxu0 0
    %127 = vmatpush1.bf16.msra.mxu0 0
    %128 = vmatprep.subr.bf16.mxu0 0
    %129 = vmatpush1.bf16.msra.mxu0 0
    %130 = vmatprep.subr.bf16.mxu0 0
    %131 = vmatpush1.bf16.msra.mxu0 0
    %132 = vmatprep.subr.bf16.mxu0 0
    %133 = vmatpush1.bf16.msra.mxu0 0
    %134 = vmatprep.subr.bf16.mxu0 0
    %135 = vmatpush1.bf16.msra.mxu0 0
    %136 = vmatprep.mubr.bf16.mxu0 0
    %137 = vmatmul.mubr.bf16.gmra.mrb[0].mxu0 %v93
    %v138 = vpop.f32.mrb[0].mxu0
    %v139 = vadd.f32 %v63, %v138
    %v140 = vpop.f32.mrb[0].mxu0
    %v141 = vpop.f32.mrb[0].mxu0
    %v142 = vadd.f32 %v63, %v141
    %v143 = vpop.f32.mrb[0].mxu0
    %144 = vmatprep.mubr.bf16.mxu0 0
    %145 = vmatmul.mubr.bf16.gmra.mrb[0].mxu0 %v96
    %v146 = vpop.f32.mrb[0].mxu0
    %v147 = vadd.f32 %v63, %v146
    %v148 = vpop.f32.mrb[0].mxu0
    %v149 = vpop.f32.mrb[0].mxu0
    %v150 = vadd.f32 %v63, %v149
    %v151 = vpop.f32.mrb[0].mxu0
    %152 = vmatprep.mubr.bf16.mxu0 0
    %153 = vmatmul.mubr.bf16.gmra.mrb[0].mxu0 %v99
    %v154 = vpop.f32.mrb[0].mxu0
    %v155 = vadd.f32 %v63, %v154
    %v156 = vpop.f32.mrb[0].mxu0
    %v157 = vpop.f32.mrb[0].mxu0
    %v158 = vadd.f32 %v63, %v157
    %v159 = vpop.f32.mrb[0].mxu0
    %160 = vmatprep.mubr.bf16.mxu0 0
    %161 = vmatmul.mubr.bf16.gmra.mrb[0].mxu0 %v102
    %v162 = vpop.f32.mrb[0].mxu0
    %v163 = vadd.f32 %v63, %v162
    %v164 = vpop.f32.mrb[0].mxu0
    %v165 = vpop.f32.mrb[0].mxu0
    %v166 = vadd.f32 %v63, %v165
    %v167 = vpop.f32.mrb[0].mxu0
    %168 = vdwg.mxu0
    %v169 = vld [vmem:[%s3] sm:$0xf]
    %v170 = vld [vmem:[%s3 + $0x4] sm:$0xf]
    %v171 = vld [vmem:[%s3 + $0x8] sm:$0xf]
    %v172 = vld [vmem:[%s3 + $0xc] sm:$0xf]
    %v173 = vld [vmem:[%s1] sm:$0xff]
    %v174 = vpack.c.bf16 %v173, %v173
    %v179 = vunpack.c.l.b16 %v169
    %v180 = vunpack.c.l.b16 %v170
    %v181 = vunpack.c.l.b16 %v171
    %v182 = vunpack.c.l.b16 %v172
    %v183 = vpack.c.b16 %v180, %v179
    %v184 = vpack.c.b16 %v182, %v181
    %vm187 = vcmask 261120
    %v189 = vsel %vm187, %v174, 0
    %191 = vmatprep.subr.bf16.mxu0 0
    %192 = vmatpush1.bf16.msra.mxu0 %v183
    %193 = vmatprep.subr.bf16.mxu0 0
    %194 = vmatpush1.bf16.msra.mxu0 %v184
    %195 = vmatprep.subr.bf16.mxu0 0
    %196 = vmatpush1.bf16.msra.mxu0 0
    %197 = vmatprep.subr.bf16.mxu0 0
    %198 = vmatpush1.bf16.msra.mxu0 0
    %199 = vmatprep.subr.bf16.mxu0 0
    %200 = vmatpush1.bf16.msra.mxu0 0
    %201 = vmatprep.subr.bf16.mxu0 0
    %202 = vmatpush1.bf16.msra.mxu0 0
    %203 = vmatprep.subr.bf16.mxu0 0
    %204 = vmatpush1.bf16.msra.mxu0 0
    %205 = vmatprep.subr.bf16.mxu0 0
    %206 = vmatpush1.bf16.msra.mxu0 0
    %207 = vmatprep.subr.bf16.mxu0 0
    %208 = vmatpush1.bf16.msra.mxu0 0
    %209 = vmatprep.subr.bf16.mxu0 0
    %210 = vmatpush1.bf16.msra.mxu0 0
    %211 = vmatprep.subr.bf16.mxu0 0
    %212 = vmatpush1.bf16.msra.mxu0 0
    %213 = vmatprep.subr.bf16.mxu0 0
    %214 = vmatpush1.bf16.msra.mxu0 0
    %215 = vmatprep.subr.bf16.mxu0 0
    %216 = vmatpush1.bf16.msra.mxu0 0
    %217 = vmatprep.subr.bf16.mxu0 0
    %218 = vmatpush1.bf16.msra.mxu0 0
    %219 = vmatprep.subr.bf16.mxu0 0
    %220 = vmatpush1.bf16.msra.mxu0 0
    %221 = vmatprep.subr.bf16.mxu0 0
    %222 = vmatpush1.bf16.msra.mxu0 0
    %223 = vmatprep.mubr.bf16.mxu0 0
    %224 = vmatmul.mubr.bf16.gmra.mrb[0].mxu0 %v189
    %v225 = vpop.f32.mrb[0].mxu0
    %v226 = vadd.f32 0.0, %v225
    %v227 = vpop.f32.mrb[0].mxu0
    %v228 = vpop.f32.mrb[0].mxu0
    %v229 = vpop.f32.mrb[0].mxu0
    %230 = vdwg.mxu0
    %v231 = vadd.f32 %v139, %v226
    %v232 = vtanh.pop %v231
    %v233 = vpack.c.bf16 %v232, %v232
    %v235 = vsel %vm187, %v233, 0
    %237 = vmatprep.subr.bf16.mxu0 0
    %238 = vmatpush1.bf16.msra.mxu0 %v183
    %239 = vmatprep.subr.bf16.mxu0 0
    %240 = vmatpush1.bf16.msra.mxu0 %v184
    %241 = vmatprep.subr.bf16.mxu0 0
    %242 = vmatpush1.bf16.msra.mxu0 0
    %243 = vmatprep.subr.bf16.mxu0 0
    %244 = vmatpush1.bf16.msra.mxu0 0
    %245 = vmatprep.subr.bf16.mxu0 0
    %246 = vmatpush1.bf16.msra.mxu0 0
    %247 = vmatprep.subr.bf16.mxu0 0
    %248 = vmatpush1.bf16.msra.mxu0 0
    %249 = vmatprep.subr.bf16.mxu0 0
    %250 = vmatpush1.bf16.msra.mxu0 0
    %251 = vmatprep.subr.bf16.mxu0 0
    %252 = vmatpush1.bf16.msra.mxu0 0
    %253 = vmatprep.subr.bf16.mxu0 0
    %254 = vmatpush1.bf16.msra.mxu0 0
    %255 = vmatprep.subr.bf16.mxu0 0
    %256 = vmatpush1.bf16.msra.mxu0 0
    %257 = vmatprep.subr.bf16.mxu0 0
    %258 = vmatpush1.bf16.msra.mxu0 0
    %259 = vmatprep.subr.bf16.mxu0 0
    %260 = vmatpush1.bf16.msra.mxu0 0
    %261 = vmatprep.subr.bf16.mxu0 0
    %262 = vmatpush1.bf16.msra.mxu0 0
    %263 = vmatprep.subr.bf16.mxu0 0
    %264 = vmatpush1.bf16.msra.mxu0 0
    %265 = vmatprep.subr.bf16.mxu0 0
    %266 = vmatpush1.bf16.msra.mxu0 0
    %267 = vmatprep.subr.bf16.mxu0 0
    %268 = vmatpush1.bf16.msra.mxu0 0
    %269 = vmatprep.mubr.bf16.mxu0 0
    %270 = vmatmul.mubr.bf16.gmra.mrb[0].mxu0 %v235
    %v271 = vpop.f32.mrb[0].mxu0
    %v272 = vadd.f32 0.0, %v271
    %v273 = vpop.f32.mrb[0].mxu0
    %v274 = vpop.f32.mrb[0].mxu0
    %v275 = vpop.f32.mrb[0].mxu0
    %276 = vdwg.mxu0
    %v277 = vadd.f32 %v142, %v272
    %v278 = vtanh.pop %v277
    %v279 = vpack.c.bf16 %v278, %v278
    %v281 = vsel %vm187, %v279, 0
    %283 = vmatprep.subr.bf16.mxu0 0
    %284 = vmatpush1.bf16.msra.mxu0 %v183
    %285 = vmatprep.subr.bf16.mxu0 0
    %286 = vmatpush1.bf16.msra.mxu0 %v184
    %287 = vmatprep.subr.bf16.mxu0 0
    %288 = vmatpush1.bf16.msra.mxu0 0
    %289 = vmatprep.subr.bf16.mxu0 0
    %290 = vmatpush1.bf16.msra.mxu0 0
    %291 = vmatprep.subr.bf16.mxu0 0
    %292 = vmatpush1.bf16.msra.mxu0 0
    %293 = vmatprep.subr.bf16.mxu0 0
    %294 = vmatpush1.bf16.msra.mxu0 0
    %295 = vmatprep.subr.bf16.mxu0 0
    %296 = vmatpush1.bf16.msra.mxu0 0
    %297 = vmatprep.subr.bf16.mxu0 0
    %298 = vmatpush1.bf16.msra.mxu0 0
    %299 = vmatprep.subr.bf16.mxu0 0
    %300 = vmatpush1.bf16.msra.mxu0 0
    %301 = vmatprep.subr.bf16.mxu0 0
    %302 = vmatpush1.bf16.msra.mxu0 0
    %303 = vmatprep.subr.bf16.mxu0 0
    %304 = vmatpush1.bf16.msra.mxu0 0
    %305 = vmatprep.subr.bf16.mxu0 0
    %306 = vmatpush1.bf16.msra.mxu0 0
    %307 = vmatprep.subr.bf16.mxu0 0
    %308 = vmatpush1.bf16.msra.mxu0 0
    %309 = vmatprep.subr.bf16.mxu0 0
    %310 = vmatpush1.bf16.msra.mxu0 0
    %311 = vmatprep.subr.bf16.mxu0 0
    %312 = vmatpush1.bf16.msra.mxu0 0
    %313 = vmatprep.subr.bf16.mxu0 0
    %314 = vmatpush1.bf16.msra.mxu0 0
    %315 = vmatprep.mubr.bf16.mxu0 0
    %316 = vmatmul.mubr.bf16.gmra.mrb[0].mxu0 %v281
    %v317 = vpop.f32.mrb[0].mxu0
    %v318 = vadd.f32 0.0, %v317
    %v319 = vpop.f32.mrb[0].mxu0
    %v320 = vpop.f32.mrb[0].mxu0
    %v321 = vpop.f32.mrb[0].mxu0
    %322 = vdwg.mxu0
    %v323 = vadd.f32 %v147, %v318
    %v324 = vtanh.pop %v323
    %v325 = vpack.c.bf16 %v324, %v324
    %v327 = vsel %vm187, %v325, 0
    %329 = vmatprep.subr.bf16.mxu0 0
    %330 = vmatpush1.bf16.msra.mxu0 %v183
    %331 = vmatprep.subr.bf16.mxu0 0
    %332 = vmatpush1.bf16.msra.mxu0 %v184
    %333 = vmatprep.subr.bf16.mxu0 0
    %334 = vmatpush1.bf16.msra.mxu0 0
    %335 = vmatprep.subr.bf16.mxu0 0
    %336 = vmatpush1.bf16.msra.mxu0 0
    %337 = vmatprep.subr.bf16.mxu0 0
    %338 = vmatpush1.bf16.msra.mxu0 0
    %339 = vmatprep.subr.bf16.mxu0 0
    %340 = vmatpush1.bf16.msra.mxu0 0
    %341 = vmatprep.subr.bf16.mxu0 0
    %342 = vmatpush1.bf16.msra.mxu0 0
    %343 = vmatprep.subr.bf16.mxu0 0
    %344 = vmatpush1.bf16.msra.mxu0 0
    %345 = vmatprep.subr.bf16.mxu0 0
    %346 = vmatpush1.bf16.msra.mxu0 0
    %347 = vmatprep.subr.bf16.mxu0 0
    %348 = vmatpush1.bf16.msra.mxu0 0
    %349 = vmatprep.subr.bf16.mxu0 0
    %350 = vmatpush1.bf16.msra.mxu0 0
    %351 = vmatprep.subr.bf16.mxu0 0
    %352 = vmatpush1.bf16.msra.mxu0 0
    %353 = vmatprep.subr.bf16.mxu0 0
    %354 = vmatpush1.bf16.msra.mxu0 0
    %355 = vmatprep.subr.bf16.mxu0 0
    %356 = vmatpush1.bf16.msra.mxu0 0
    %357 = vmatprep.subr.bf16.mxu0 0
    %358 = vmatpush1.bf16.msra.mxu0 0
    %359 = vmatprep.subr.bf16.mxu0 0
    %360 = vmatpush1.bf16.msra.mxu0 0
    %361 = vmatprep.mubr.bf16.mxu0 0
    %362 = vmatmul.mubr.bf16.gmra.mrb[0].mxu0 %v327
    %v363 = vpop.f32.mrb[0].mxu0
    %v364 = vadd.f32 0.0, %v363
    %v365 = vpop.f32.mrb[0].mxu0
    %v366 = vpop.f32.mrb[0].mxu0
    %v367 = vpop.f32.mrb[0].mxu0
    %368 = vdwg.mxu0
    %v369 = vadd.f32 %v150, %v364
    %v370 = vtanh.pop %v369
    %v371 = vpack.c.bf16 %v370, %v370
    %v373 = vsel %vm187, %v371, 0
    %375 = vmatprep.subr.bf16.mxu0 0
    %376 = vmatpush1.bf16.msra.mxu0 %v183
    %377 = vmatprep.subr.bf16.mxu0 0
    %378 = vmatpush1.bf16.msra.mxu0 %v184
    %379 = vmatprep.subr.bf16.mxu0 0
    %380 = vmatpush1.bf16.msra.mxu0 0
    %381 = vmatprep.subr.bf16.mxu0 0
    %382 = vmatpush1.bf16.msra.mxu0 0
    %383 = vmatprep.subr.bf16.mxu0 0
    %384 = vmatpush1.bf16.msra.mxu0 0
    %385 = vmatprep.subr.bf16.mxu0 0
    %386 = vmatpush1.bf16.msra.mxu0 0
    %387 = vmatprep.subr.bf16.mxu0 0
    %388 = vmatpush1.bf16.msra.mxu0 0
    %389 = vmatprep.subr.bf16.mxu0 0
    %390 = vmatpush1.bf16.msra.mxu0 0
    %391 = vmatprep.subr.bf16.mxu0 0
    %392 = vmatpush1.bf16.msra.mxu0 0
    %393 = vmatprep.subr.bf16.mxu0 0
    %394 = vmatpush1.bf16.msra.mxu0 0
    %395 = vmatprep.subr.bf16.mxu0 0
    %396 = vmatpush1.bf16.msra.mxu0 0
    %397 = vmatprep.subr.bf16.mxu0 0
    %398 = vmatpush1.bf16.msra.mxu0 0
    %399 = vmatprep.subr.bf16.mxu0 0
    %400 = vmatpush1.bf16.msra.mxu0 0
    %401 = vmatprep.subr.bf16.mxu0 0
    %402 = vmatpush1.bf16.msra.mxu0 0
    %403 = vmatprep.subr.bf16.mxu0 0
    %404 = vmatpush1.bf16.msra.mxu0 0
    %405 = vmatprep.subr.bf16.mxu0 0
    %406 = vmatpush1.bf16.msra.mxu0 0
    %407 = vmatprep.mubr.bf16.mxu0 0
    %408 = vmatmul.mubr.bf16.gmra.mrb[0].mxu0 %v373
    %v409 = vpop.f32.mrb[0].mxu0
    %v410 = vadd.f32 0.0, %v409
    %v411 = vpop.f32.mrb[0].mxu0
    %v412 = vpop.f32.mrb[0].mxu0
    %v413 = vpop.f32.mrb[0].mxu0
    %414 = vdwg.mxu0
    %v415 = vadd.f32 %v155, %v410
    %v416 = vtanh.pop %v415
    %v417 = vpack.c.bf16 %v416, %v416
    %v419 = vsel %vm187, %v417, 0
    %421 = vmatprep.subr.bf16.mxu0 0
    %422 = vmatpush1.bf16.msra.mxu0 %v183
    %423 = vmatprep.subr.bf16.mxu0 0
    %424 = vmatpush1.bf16.msra.mxu0 %v184
    %425 = vmatprep.subr.bf16.mxu0 0
    %426 = vmatpush1.bf16.msra.mxu0 0
    %427 = vmatprep.subr.bf16.mxu0 0
    %428 = vmatpush1.bf16.msra.mxu0 0
    %429 = vmatprep.subr.bf16.mxu0 0
    %430 = vmatpush1.bf16.msra.mxu0 0
    %431 = vmatprep.subr.bf16.mxu0 0
    %432 = vmatpush1.bf16.msra.mxu0 0
    %433 = vmatprep.subr.bf16.mxu0 0
    %434 = vmatpush1.bf16.msra.mxu0 0
    %435 = vmatprep.subr.bf16.mxu0 0
    %436 = vmatpush1.bf16.msra.mxu0 0
    %437 = vmatprep.subr.bf16.mxu0 0
    %438 = vmatpush1.bf16.msra.mxu0 0
    %439 = vmatprep.subr.bf16.mxu0 0
    %440 = vmatpush1.bf16.msra.mxu0 0
    %441 = vmatprep.subr.bf16.mxu0 0
    %442 = vmatpush1.bf16.msra.mxu0 0
    %443 = vmatprep.subr.bf16.mxu0 0
    %444 = vmatpush1.bf16.msra.mxu0 0
    %445 = vmatprep.subr.bf16.mxu0 0
    %446 = vmatpush1.bf16.msra.mxu0 0
    %447 = vmatprep.subr.bf16.mxu0 0
    %448 = vmatpush1.bf16.msra.mxu0 0
    %449 = vmatprep.subr.bf16.mxu0 0
    %450 = vmatpush1.bf16.msra.mxu0 0
    %451 = vmatprep.subr.bf16.mxu0 0
    %452 = vmatpush1.bf16.msra.mxu0 0
    %453 = vmatprep.mubr.bf16.mxu0 0
    %454 = vmatmul.mubr.bf16.gmra.mrb[0].mxu0 %v419
    %v455 = vpop.f32.mrb[0].mxu0
    %v456 = vadd.f32 0.0, %v455
    %v457 = vpop.f32.mrb[0].mxu0
    %v458 = vpop.f32.mrb[0].mxu0
    %v459 = vpop.f32.mrb[0].mxu0
    %460 = vdwg.mxu0
    %v461 = vadd.f32 %v158, %v456
    %v462 = vtanh.pop %v461
    %v463 = vpack.c.bf16 %v462, %v462
    %v465 = vsel %vm187, %v463, 0
    %467 = vmatprep.subr.bf16.mxu0 0
    %468 = vmatpush1.bf16.msra.mxu0 %v183
    %469 = vmatprep.subr.bf16.mxu0 0
    %470 = vmatpush1.bf16.msra.mxu0 %v184
    %471 = vmatprep.subr.bf16.mxu0 0
    %472 = vmatpush1.bf16.msra.mxu0 0
    %473 = vmatprep.subr.bf16.mxu0 0
    %474 = vmatpush1.bf16.msra.mxu0 0
    %475 = vmatprep.subr.bf16.mxu0 0
    %476 = vmatpush1.bf16.msra.mxu0 0
    %477 = vmatprep.subr.bf16.mxu0 0
    %478 = vmatpush1.bf16.msra.mxu0 0
    %479 = vmatprep.subr.bf16.mxu0 0
    %480 = vmatpush1.bf16.msra.mxu0 0
    %481 = vmatprep.subr.bf16.mxu0 0
    %482 = vmatpush1.bf16.msra.mxu0 0
    %483 = vmatprep.subr.bf16.mxu0 0
    %484 = vmatpush1.bf16.msra.mxu0 0
    %485 = vmatprep.subr.bf16.mxu0 0
    %486 = vmatpush1.bf16.msra.mxu0 0
    %487 = vmatprep.subr.bf16.mxu0 0
    %488 = vmatpush1.bf16.msra.mxu0 0
    %489 = vmatprep.subr.bf16.mxu0 0
    %490 = vmatpush1.bf16.msra.mxu0 0
    %491 = vmatprep.subr.bf16.mxu0 0
    %492 = vmatpush1.bf16.msra.mxu0 0
    %493 = vmatprep.subr.bf16.mxu0 0
    %494 = vmatpush1.bf16.msra.mxu0 0
    %495 = vmatprep.subr.bf16.mxu0 0
    %496 = vmatpush1.bf16.msra.mxu0 0
    %497 = vmatprep.subr.bf16.mxu0 0
    %498 = vmatpush1.bf16.msra.mxu0 0
    %499 = vmatprep.mubr.bf16.mxu0 0
    %500 = vmatmul.mubr.bf16.gmra.mrb[0].mxu0 %v465
    %v501 = vpop.f32.mrb[0].mxu0
    %v502 = vadd.f32 0.0, %v501
    %v503 = vpop.f32.mrb[0].mxu0
    %v504 = vpop.f32.mrb[0].mxu0
    %v505 = vpop.f32.mrb[0].mxu0
    %506 = vdwg.mxu0
    %v507 = vadd.f32 %v163, %v502
    %v508 = vtanh.pop %v507
    %v509 = vpack.c.bf16 %v508, %v508
    %v511 = vsel %vm187, %v509, 0
    %513 = vmatprep.subr.bf16.mxu0 0
    %514 = vmatpush1.bf16.msra.mxu0 %v183
    %515 = vmatprep.subr.bf16.mxu0 0
    %516 = vmatpush1.bf16.msra.mxu0 %v184
    %517 = vmatprep.subr.bf16.mxu0 0
    %518 = vmatpush1.bf16.msra.mxu0 0
    %519 = vmatprep.subr.bf16.mxu0 0
    %520 = vmatpush1.bf16.msra.mxu0 0
    %521 = vmatprep.subr.bf16.mxu0 0
    %522 = vmatpush1.bf16.msra.mxu0 0
    %523 = vmatprep.subr.bf16.mxu0 0
    %524 = vmatpush1.bf16.msra.mxu0 0
    %525 = vmatprep.subr.bf16.mxu0 0
    %526 = vmatpush1.bf16.msra.mxu0 0
    %527 = vmatprep.subr.bf16.mxu0 0
    %528 = vmatpush1.bf16.msra.mxu0 0
    %529 = vmatprep.subr.bf16.mxu0 0
    %530 = vmatpush1.bf16.msra.mxu0 0
    %531 = vmatprep.subr.bf16.mxu0 0
    %532 = vmatpush1.bf16.msra.mxu0 0
    %533 = vmatprep.subr.bf16.mxu0 0
    %534 = vmatpush1.bf16.msra.mxu0 0
    %535 = vmatprep.subr.bf16.mxu0 0
    %536 = vmatpush1.bf16.msra.mxu0 0
    %537 = vmatprep.subr.bf16.mxu0 0
    %538 = vmatpush1.bf16.msra.mxu0 0
    %539 = vmatprep.subr.bf16.mxu0 0
    %540 = vmatpush1.bf16.msra.mxu0 0
    %541 = vmatprep.subr.bf16.mxu0 0
    %542 = vmatpush1.bf16.msra.mxu0 0
    %543 = vmatprep.subr.bf16.mxu0 0
    %544 = vmatpush1.bf16.msra.mxu0 0
    %545 = vmatprep.mubr.bf16.mxu0 0
    %546 = vmatmul.mubr.bf16.gmra.mrb[0].mxu0 %v511
    %v547 = vpop.f32.mrb[0].mxu0
    %v548 = vadd.f32 0.0, %v547
    %v549 = vpop.f32.mrb[0].mxu0
    %v550 = vpop.f32.mrb[0].mxu0
    %v551 = vpop.f32.mrb[0].mxu0
    %552 = vdwg.mxu0
    %v553 = vadd.f32 %v166, %v548
    %v554 = vtanh.pop %v553
    %555 = vst.msk [vmem:[#allocation6] sm:$0xff] %vm187, %v554
    %v556 = vpack.c.bf16 %v278, %v232
    %v557 = vpack.c.bf16 %v370, %v324
    %v558 = vpack.c.bf16 %v462, %v416
    %v559 = vpack.c.bf16 %v554, %v508
    %v560 = vld [vmem:[%s6] sm:$0x1]
    %v562 = vlaneseq
    %v563 = vshrl.u32 %v562, 7
    %v564 = vsub.s32 0, %v563
    %v565 = vrot.slane %v560, %v564
    %v568 = vsel %vm187, %v556, 0
    %v571 = vsel %vm187, %v557, 0
    %v574 = vsel %vm187, %v558, 0
    %v577 = vsel %vm187, %v559, 0
    %579 = vmatprep.subr.bf16.mxu0 0
    %580 = vmatpush1.bf16.msra.mxu0 %v183
    %581 = vmatprep.subr.bf16.mxu0 0
    %582 = vmatpush1.bf16.msra.mxu0 %v184
    %583 = vmatprep.subr.bf16.mxu0 0
    %584 = vmatpush1.bf16.msra.mxu0 0
    %585 = vmatprep.subr.bf16.mxu0 0
    %586 = vmatpush1.bf16.msra.mxu0 0
    %587 = vmatprep.subr.bf16.mxu0 0
    %588 = vmatpush1.bf16.msra.mxu0 0
    %589 = vmatprep.subr.bf16.mxu0 0
    %590 = vmatpush1.bf16.msra.mxu0 0
    %591 = vmatprep.subr.bf16.mxu0 0
    %592 = vmatpush1.bf16.msra.mxu0 0
    %593 = vmatprep.subr.bf16.mxu0 0
    %594 = vmatpush1.bf16.msra.mxu0 0
    %595 = vmatprep.subr.bf16.mxu0 0
    %596 = vmatpush1.bf16.msra.mxu0 0
    %597 = vmatprep.subr.bf16.mxu0 0
    %598 = vmatpush1.bf16.msra.mxu0 0
    %599 = vmatprep.subr.bf16.mxu0 0
    %600 = vmatpush1.bf16.msra.mxu0 0
    %601 = vmatprep.subr.bf16.mxu0 0
    %602 = vmatpush1.bf16.msra.mxu0 0
    %603 = vmatprep.subr.bf16.mxu0 0
    %604 = vmatpush1.bf16.msra.mxu0 0
    %605 = vmatprep.subr.bf16.mxu0 0
    %606 = vmatpush1.bf16.msra.mxu0 0
    %607 = vmatprep.subr.bf16.mxu0 0
    %608 = vmatpush1.bf16.msra.mxu0 0
    %609 = vmatprep.subr.bf16.mxu0 0
    %610 = vmatpush1.bf16.msra.mxu0 0
    %611 = vmatprep.mubr.bf16.mxu0 0
    %612 = vmatmul.mubr.bf16.gmra.mrb[0].mxu0 %v568
    %v613 = vpop.f32.mrb[0].mxu0
    %v614 = vadd.f32 %v565, %v613
    %v615 = vpop.f32.mrb[0].mxu0
    %v616 = vpop.f32.mrb[0].mxu0
    %v617 = vadd.f32 %v565, %v616
    %v618 = vpop.f32.mrb[0].mxu0
    %619 = vmatprep.mubr.bf16.mxu0 0
    %620 = vmatmul.mubr.bf16.gmra.mrb[0].mxu0 %v571
    %v621 = vpop.f32.mrb[0].mxu0
    %v622 = vadd.f32 %v565, %v621
    %v623 = vpop.f32.mrb[0].mxu0
    %v624 = vpop.f32.mrb[0].mxu0
    %v625 = vadd.f32 %v565, %v624
    %v626 = vpop.f32.mrb[0].mxu0
    %627 = vmatprep.mubr.bf16.mxu0 0
    %628 = vmatmul.mubr.bf16.gmra.mrb[0].mxu0 %v574
    %v629 = vpop.f32.mrb[0].mxu0
    %v630 = vadd.f32 %v565, %v629
    %v631 = vpop.f32.mrb[0].mxu0
    %v632 = vpop.f32.mrb[0].mxu0
    %v633 = vadd.f32 %v565, %v632
    %v634 = vpop.f32.mrb[0].mxu0
    %635 = vmatprep.mubr.bf16.mxu0 0
    %636 = vmatmul.mubr.bf16.gmra.mrb[0].mxu0 %v577
    %v637 = vpop.f32.mrb[0].mxu0
    %v638 = vadd.f32 %v565, %v637
    %v639 = vpop.f32.mrb[0].mxu0
    %v640 = vpop.f32.mrb[0].mxu0
    %v641 = vadd.f32 %v565, %v640
    %v642 = vpop.f32.mrb[0].mxu0
    %643 = vdwg.mxu0
    %v644 = vtanh.pop %v614
    %v645 = vtanh.pop %v617
    %v646 = vtanh.pop %v622
    %v647 = vtanh.pop %v625
    %v648 = vtanh.pop %v630
    %v649 = vtanh.pop %v633
    %v650 = vtanh.pop %v638
    %v651 = vtanh.pop %v641
    %v652 = vpack.c.bf16 %v645, %v644
    %v653 = vpack.c.bf16 %v647, %v646
    %v654 = vpack.c.bf16 %v649, %v648
    %v655 = vpack.c.bf16 %v651, %v650
    %v656 = vld [vmem:[%s4] sm:$0xf]
    %v657 = vld [vmem:[%s4 + $0x4] sm:$0xf]
    %v658 = vld [vmem:[%s4 + $0x8] sm:$0xf]
    %v659 = vld [vmem:[%s4 + $0xc] sm:$0xf]
    %v660 = vld [vmem:[%s7] sm:$0x1]
    %v662 = vlaneseq
    %v663 = vshrl.u32 %v662, 7
    %v664 = vsub.s32 0, %v663
    %v665 = vrot.slane %v660, %v664
    %v671 = vunpack.c.l.b16 %v656
    %v672 = vunpack.c.l.b16 %v657
    %v673 = vunpack.c.l.b16 %v658
    %v674 = vunpack.c.l.b16 %v659
    %v675 = vpack.c.b16 %v672, %v671
    %v676 = vpack.c.b16 %v674, %v673
    %v680 = vsel %vm187, %v652, 0
    %v683 = vsel %vm187, %v653, 0
    %v686 = vsel %vm187, %v654, 0
    %v689 = vsel %vm187, %v655, 0
    %691 = vmatprep.subr.bf16.mxu0 0
    %692 = vmatpush1.bf16.msra.mxu0 %v675
    %693 = vmatprep.subr.bf16.mxu0 0
    %694 = vmatpush1.bf16.msra.mxu0 %v676
    %695 = vmatprep.subr.bf16.mxu0 0
    %696 = vmatpush1.bf16.msra.mxu0 0
    %697 = vmatprep.subr.bf16.mxu0 0
    %698 = vmatpush1.bf16.msra.mxu0 0
    %699 = vmatprep.subr.bf16.mxu0 0
    %700 = vmatpush1.bf16.msra.mxu0 0
    %701 = vmatprep.subr.bf16.mxu0 0
    %702 = vmatpush1.bf16.msra.mxu0 0
    %703 = vmatprep.subr.bf16.mxu0 0
    %704 = vmatpush1.bf16.msra.mxu0 0
    %705 = vmatprep.subr.bf16.mxu0 0
    %706 = vmatpush1.bf16.msra.mxu0 0
    %707 = vmatprep.subr.bf16.mxu0 0
    %708 = vmatpush1.bf16.msra.mxu0 0
    %709 = vmatprep.subr.bf16.mxu0 0
    %710 = vmatpush1.bf16.msra.mxu0 0
    %711 = vmatprep.subr.bf16.mxu0 0
    %712 = vmatpush1.bf16.msra.mxu0 0
    %713 = vmatprep.subr.bf16.mxu0 0
    %714 = vmatpush1.bf16.msra.mxu0 0
    %715 = vmatprep.subr.bf16.mxu0 0
    %716 = vmatpush1.bf16.msra.mxu0 0
    %717 = vmatprep.subr.bf16.mxu0 0
    %718 = vmatpush1.bf16.msra.mxu0 0
    %719 = vmatprep.subr.bf16.mxu0 0
    %720 = vmatpush1.bf16.msra.mxu0 0
    %721 = vmatprep.subr.bf16.mxu0 0
    %722 = vmatpush1.bf16.msra.mxu0 0
    %723 = vmatprep.mubr.bf16.mxu0 0
    %724 = vmatmul.mubr.bf16.gmra.mrb[0].mxu0 %v680
    %v725 = vpop.f32.mrb[0].mxu0
    %v726 = vadd.f32 %v665, %v725
    %v727 = vpop.f32.mrb[0].mxu0
    %v728 = vpop.f32.mrb[0].mxu0
    %v729 = vadd.f32 %v665, %v728
    %v730 = vpop.f32.mrb[0].mxu0
    %731 = vmatprep.mubr.bf16.mxu0 0
    %732 = vmatmul.mubr.bf16.gmra.mrb[0].mxu0 %v683
    %v733 = vpop.f32.mrb[0].mxu0
    %v734 = vadd.f32 %v665, %v733
    %v735 = vpop.f32.mrb[0].mxu0
    %v736 = vpop.f32.mrb[0].mxu0
    %v737 = vadd.f32 %v665, %v736
    %v738 = vpop.f32.mrb[0].mxu0
    %739 = vmatprep.mubr.bf16.mxu0 0
    %740 = vmatmul.mubr.bf16.gmra.mrb[0].mxu0 %v686
    %v741 = vpop.f32.mrb[0].mxu0
    %v742 = vadd.f32 %v665, %v741
    %v743 = vpop.f32.mrb[0].mxu0
    %v744 = vpop.f32.mrb[0].mxu0
    %v745 = vadd.f32 %v665, %v744
    %v746 = vpop.f32.mrb[0].mxu0
    %747 = vmatprep.mubr.bf16.mxu0 0
    %748 = vmatmul.mubr.bf16.gmra.mrb[0].mxu0 %v689
    %v749 = vpop.f32.mrb[0].mxu0
    %v750 = vadd.f32 %v665, %v749
    %v751 = vpop.f32.mrb[0].mxu0
    %v752 = vpop.f32.mrb[0].mxu0
    %v753 = vadd.f32 %v665, %v752
    %v754 = vpop.f32.mrb[0].mxu0
    %755 = vdwg.mxu0
    %756 = vmax.xlane.f32.xlu0 %v726
    %v757 = vpop.xlane.xlu0 %756
    %758 = vmax.xlane.f32.xlu0 %v729
    %v759 = vpop.xlane.xlu0 %758
    %760 = vmax.xlane.f32.xlu0 %v734
    %v761 = vpop.xlane.xlu0 %760
    %762 = vmax.xlane.f32.xlu0 %v737
    %v763 = vpop.xlane.xlu0 %762
    %764 = vmax.xlane.f32.xlu0 %v742
    %v765 = vpop.xlane.xlu0 %764
    %766 = vmax.xlane.f32.xlu0 %v745
    %v767 = vpop.xlane.xlu0 %766
    %768 = vmax.xlane.f32.xlu0 %v750
    %v769 = vpop.xlane.xlu0 %768
    %770 = vmax.xlane.f32.xlu0 %v753
    %v771 = vpop.xlane.xlu0 %770
    %v772 = vsub.f32 %v726, %v757
    %v773 = vsub.f32 %v729, %v759
    %v774 = vsub.f32 %v734, %v761
    %v775 = vsub.f32 %v737, %v763
    %v776 = vsub.f32 %v742, %v765
    %v777 = vsub.f32 %v745, %v767
    %v778 = vsub.f32 %v750, %v769
    %v779 = vsub.f32 %v753, %v771
    %v780 = vmul.f32 %v772, 1.442695
    %v781 = vpow.pop %v780
    %v782 = vmul.f32 %v773, 1.442695
    %v783 = vpow.pop %v782
    %v784 = vmul.f32 %v774, 1.442695
    %v785 = vpow.pop %v784
    %v786 = vmul.f32 %v775, 1.442695
    %v787 = vpow.pop %v786
    %v788 = vmul.f32 %v776, 1.442695
    %v789 = vpow.pop %v788
    %v790 = vmul.f32 %v777, 1.442695
    %v791 = vpow.pop %v790
    %v792 = vmul.f32 %v778, 1.442695
    %v793 = vpow.pop %v792
    %v794 = vmul.f32 %v779, 1.442695
    %v795 = vpow.pop %v794
    %796 = vadd.xlane.f32.xlu0 %v781
    %v797 = vpop.xlane.xlu0 %796
    %798 = vadd.xlane.f32.xlu0 %v783
    %v799 = vpop.xlane.xlu0 %798
    %800 = vadd.xlane.f32.xlu0 %v785
    %v801 = vpop.xlane.xlu0 %800
    %802 = vadd.xlane.f32.xlu0 %v787
    %v803 = vpop.xlane.xlu0 %802
    %804 = vadd.xlane.f32.xlu0 %v789
    %v805 = vpop.xlane.xlu0 %804
    %806 = vadd.xlane.f32.xlu0 %v791
    %v807 = vpop.xlane.xlu0 %806
    %808 = vadd.xlane.f32.xlu0 %v793
    %v809 = vpop.xlane.xlu0 %808
    %810 = vadd.xlane.f32.xlu0 %v795
    %v811 = vpop.xlane.xlu0 %810
    %v812 = vrcp.pop %v797
    %v813 = vrcp.pop %v799
    %v814 = vrcp.pop %v801
    %v815 = vrcp.pop %v803
    %v816 = vrcp.pop %v805
    %v817 = vrcp.pop %v807
    %v818 = vrcp.pop %v809
    %v819 = vrcp.pop %v811
    %v820 = vmul.f32 %v781, %v812
    %v821 = vmul.f32 %v783, %v813
    %v822 = vmul.f32 %v785, %v814
    %v823 = vmul.f32 %v787, %v815
    %v824 = vmul.f32 %v789, %v816
    %v825 = vmul.f32 %v791, %v817
    %v826 = vmul.f32 %v793, %v818
    %v827 = vmul.f32 %v795, %v819
    %828 = vst [vmem:[#allocation5] sm:$0xff] %v820
    %829 = vst [vmem:[#allocation5 + $0x8] sm:$0xff] %v821
    %830 = vst [vmem:[#allocation5 + $0x10] sm:$0xff] %v822
    %831 = vst [vmem:[#allocation5 + $0x18] sm:$0xff] %v823
    %832 = vst [vmem:[#allocation5 + $0x20] sm:$0xff] %v824
    %833 = vst [vmem:[#allocation5 + $0x28] sm:$0xff] %v825
    %834 = vst [vmem:[#allocation5 + $0x30] sm:$0xff] %v826
    %835 = vst [vmem:[#allocation5 + $0x38] sm:$0xff] %v827
    // Predicated region
    $region38: #{tpu_custom_call.1} parent=1 // pred_check
      _
    $region39: #{tpu_custom_call.1} parent=1 // pred_check_branch
      %837 = sbr.rel (0) target = $region41
    $region40: #{tpu_custom_call.1} parent=1 // pred_region
      %s839 = ssub.s32 1024, 1024
      %840 = vsyncadd [#allocation4], %s839
      %s841 = sshll.u32 [#allocation5], 4
      %s842 = int_to_ptr.vmem [resolvable:$true] %s841
      %847 = dma.vmem_to_hbm [thread:$0]  %s842, 1024, %s8, [#allocation4], 128, 128, 8
    $region41: #{tpu_custom_call.1} parent=1 // pred_fallthru
      _
    // Predicated region
    $region42: #{tpu_custom_call.1} parent=1 // pred_check
      _
    $region43: #{tpu_custom_call.1} parent=1 // pred_check_branch
      %849 = sbr.rel (0) target = $region45
    $region44: #{tpu_custom_call.1} parent=1 // pred_region
      %s851 = ssub.s32 128, 128
      %852 = vsyncadd [#allocation7], %s851
      %s854 = sshll.u32 [#allocation6], 4
      %s855 = int_to_ptr.vmem [resolvable:$true] %s854
      %857 = dma.vmem_to_hbm [thread:$0]  %s855, 128, %s9, [#allocation7]
    $region45: #{tpu_custom_call.1} parent=1 // pred_fallthru
      _
    // Predicated region
    $region46: #{tpu_custom_call.1} parent=1 // pred_check
      _
    $region47: #{tpu_custom_call.1} parent=1 // pred_check_branch
      %859 = sbr.rel (0) target = $region49
    $region48: #{tpu_custom_call.1} parent=1 // pred_region
      %860 = dma.done [#allocation4], 1024
    $region49: #{tpu_custom_call.1} parent=1 // pred_fallthru
      _
    // Predicated region
    $region50: #{tpu_custom_call.1} parent=1 // pred_check
      _
    $region51: #{tpu_custom_call.1} parent=1 // pred_check_branch
      %862 = sbr.rel (0) target = $region53
    $region52: #{tpu_custom_call.1} parent=1 // pred_region
      %863 = dma.done [#allocation7], 128
    $region53: #{tpu_custom_call.1} parent=1 // pred_fallthru
      _
    %864 = vsyncpa [#allocation3], 1
    %865 = vsyncpa [#allocation4], 1
    %866 = vsyncpa [#allocation7], 1

</llo_original>
